<compile_context>
chip_gen: v7x
topology: tpu7x:2x2x1
jax: 0.10.0
libtpu: 0.0.40
codegen_flags: <defaults>
</compile_context>

<pallas_src>
import math

import jax
import jax.numpy as jnp
from jax.experimental import pallas as pl
from jax.experimental.pallas import tpu as pltpu


# ----------------------------------------------------------------------------
# Kernel:  y_tile = x_tile @ W + b      (single full-K, full-N block)
#   x_tile : (tm, K)   W : (K, Dout)   b : (1, Dout)   y_tile : (tm, Dout)
# ----------------------------------------------------------------------------
def _patch_linear_kernel(x_ref, w_ref, b_ref, o_ref):
    acc = jnp.dot(x_ref[...], w_ref[...], preferred_element_type=jnp.float32)
    o_ref[...] = (acc + b_ref[...]).astype(o_ref.dtype)


def pallas_patch_linear(patches, w_t, bias, *, out_dtype=None, tm=512,
                        vmem_limit_bytes=None):
    """y = patches @ w_t + bias.

    1-D grid over M; the (K, d_model) weight and the bias stay VMEM-resident
    across the whole grid (constant block index).  K is the full contraction
    dimension (no K tiling, no accumulator scratch).
    """
    M, K = patches.shape
    K2, N = w_t.shape
    assert K == K2, (K, K2)
    if out_dtype is None:
        out_dtype = patches.dtype
    bias2d = bias.reshape(1, N)

    # Sublane alignment for the M tile: pad only in the rare ragged case.
    pad_m = (-M) % 8
    if pad_m:
        patches = jnp.pad(patches, ((0, pad_m), (0, 0)))
    Mp = M + pad_m

    tm = min(tm, Mp)
    grid_m = pl.cdiv(Mp, tm)

    cost = pl.CostEstimate(
        flops=2 * M * K * N,
        transcendentals=0,
        bytes_accessed=(
            patches.size * patches.dtype.itemsize      # one pass over patches
            + w_t.size * w_t.dtype.itemsize            # weight loaded once
            + M * N * jnp.dtype(out_dtype).itemsize    # output written once
            + bias2d.size * bias2d.dtype.itemsize
        ),
    )

    out = pl.pallas_call(
        _patch_linear_kernel,
        out_shape=jax.ShapeDtypeStruct((Mp, N), out_dtype),
        grid_spec=pltpu.PrefetchScalarGridSpec(
            num_scalar_prefetch=0,
            grid=(grid_m,),
            in_specs=[
                pl.BlockSpec((tm, K), lambda i: (i, 0)),   # patches: streamed over M
                pl.BlockSpec((K, N), lambda i: (0, 0)),    # weight: VMEM-resident
                pl.BlockSpec((1, N), lambda i: (0, 0)),    # bias:   VMEM-resident
            ],
            out_specs=pl.BlockSpec((tm, N), lambda i: (i, 0)),
        ),
        compiler_params=pltpu.CompilerParams(
            dimension_semantics=("parallel",),
            vmem_limit_bytes=vmem_limit_bytes,
        ),
        cost_estimate=cost,
    )(patches, w_t, bias2d)

    return out[:M] if pad_m else out


# ----------------------------------------------------------------------------
# Patch extraction (im2col).  Pure layout plumbing in the wrapper; feature
# ordering is (c, ph, pw) to match PyTorch's Conv2d weight flatten (C, kH, kW).
# ----------------------------------------------------------------------------
# TODO(synk): im2col is a wrapper-side reshape/transpose (one extra HBM pass over
# x) rather than an in-kernel DMA gather of patch rows fused into the GEMM.
def extract_patches(x, patch_size):
    B, C, H, W = x.shape
    P = patch_size
    assert H % P == 0 and W % P == 0, "spatial dims must be divisible by patch_size"
    nh, nw = H // P, W // P
    x = x.reshape(B, C, nh, P, nw, P)
    x = x.transpose(0, 2, 4, 1, 3, 5)          # (B, nh, nw, C, P, P)
    return x.reshape(B * nh * nw, C * P * P)   # (B*N, C*P*P)


# ----------------------------------------------------------------------------
# Module wrapper (PyTorch-equivalent parameters / forward semantics)
# ----------------------------------------------------------------------------
class PatchEmbeddingPallas:
    def __init__(self, d_model, patch_size, key, in_channels=3,
                 compute_dtype=jnp.float32, tm=512, vmem_limit_bytes=None):
        self.d_model = d_model
        self.patch_size = patch_size
        self.in_channels = in_channels
        self.compute_dtype = compute_dtype
        self.tm = tm
        self.vmem_limit_bytes = vmem_limit_bytes

        fan_in = in_channels * patch_size * patch_size
        bound = 1.0 / math.sqrt(fan_in)
        kw, kb = jax.random.split(key)
        # PyTorch Conv2d weight layout: (out_channels, in_channels, kH, kW)
        self.weight = jax.random.uniform(
            kw, (d_model, in_channels, patch_size, patch_size),
            jnp.float32, -bound, bound)
        self.bias = jax.random.uniform(kb, (d_model,), jnp.float32, -bound, bound)
        # Pre-transpose once: (C*P*P, d_model); pre-cast to the compute dtype so
        # the MXU sees bf16 operands on v5e/v6e/v7x when requested.
        self.w_t = self.weight.reshape(d_model, fan_in).T.astype(compute_dtype)

    def __call__(self, x):
        B, C, H, W = x.shape
        assert C == self.in_channels
        P = self.patch_size
        nh, nw = H // P, W // P
        n_patches = nh * nw

        patches = extract_patches(x, P).astype(self.compute_dtype)   # (B*N, C*P*P)
        y = pallas_patch_linear(
            patches, self.w_t, self.bias,
            out_dtype=x.dtype, tm=self.tm,
            vmem_limit_bytes=self.vmem_limit_bytes)                  # (B*N, d_model)
        return y.reshape(B, n_patches, self.d_model)


# ----------------------------------------------------------------------------
# Pure-JAX reference (for correctness checking only): real conv + flatten + T
# ----------------------------------------------------------------------------
def reference_forward(mod, x):
    P = mod.patch_size
    y = jax.lax.conv_general_dilated(
        x, mod.weight, window_strides=(P, P), padding="VALID",
        dimension_numbers=("NCHW", "OIHW", "NCHW"))
    y = y + mod.bias.reshape(1, -1, 1, 1)
    B, D, h, w = y.shape
    return y.reshape(B, D, h * w).transpose(0, 2, 1)


if __name__ == "__main__":
    B, C, H, W = 2, 3, 16, 16
    patch_size = 4
    d_model = 32

    root = jax.random.PRNGKey(0)
    k_param, k_x = jax.random.split(root)
    x = jax.random.normal(k_x, (B, C, H, W), jnp.float32)
    n_patches = (H // patch_size) * (W // patch_size)

    # f32 compute path — strict check against the conv reference.
    mod = PatchEmbeddingPallas(d_model=d_model, patch_size=patch_size, key=k_param)
    out = jax.block_until_ready(mod(x))
    ref = reference_forward(mod, x)
    assert out.shape == (B, n_patches, d_model)
    assert jnp.allclose(out, ref, atol=1e-4, rtol=1e-4), "f32 mismatch vs reference"

    # bf16 compute path (MXU-preferred on v5e/v6e/v7x) — looser tolerance.
    mod_bf16 = PatchEmbeddingPallas(d_model=d_model, patch_size=patch_size,
                                    key=k_param, compute_dtype=jnp.bfloat16)
    out_bf16 = jax.block_until_ready(mod_bf16(x))
    assert out_bf16.shape == (B, n_patches, d_model)
    assert jnp.allclose(out_bf16.astype(jnp.float32), ref, atol=7.5e-2, rtol=5e-2), \
        "bf16 mismatch vs reference"

    print("KERNEL_OK")
</pallas_src>

<mosaic_0001>
module attributes {stable_mosaic.version = 11 : i64} {
  func.func @_patch_linear_kernel(%arg0: i32, %arg1: memref<32x48xf32, #tpu.memory_space<vmem>>, %arg2: memref<48x32xf32, #tpu.memory_space<vmem>>, %arg3: memref<1x32xf32, #tpu.memory_space<vmem>>, %arg4: memref<32x32xf32, #tpu.memory_space<vmem>>) attributes {dimension_semantics = [#tpu.dimension_semantics<parallel>], iteration_bounds = array<i64: 1>, scalar_prefetch = 0 : i64, scratch_operands = 0 : i64, tpu.core_type = #tpu.core_type<tc>, window_params = [{transform_indices = @transform_0, window_bounds = array<i64: 32, 48>}, {pipeline_mode = #tpu.pipeline_mode<synchronous>, transform_indices = @transform_1, window_bounds = array<i64: 48, 32>}, {pipeline_mode = #tpu.pipeline_mode<synchronous>, transform_indices = @transform_2, window_bounds = array<i64: 1, 32>}, {transform_indices = @transform_3, window_bounds = array<i64: 32, 32>}]} {
    %c0 = arith.constant 0 : index
    %c0_0 = arith.constant 0 : index
    %0 = vector.load %arg1[%c0, %c0_0] : memref<32x48xf32, #tpu.memory_space<vmem>>, vector<32x48xf32>
    %c0_1 = arith.constant 0 : index
    %c0_2 = arith.constant 0 : index
    %1 = vector.load %arg2[%c0_1, %c0_2] : memref<48x32xf32, #tpu.memory_space<vmem>>, vector<48x32xf32>
    %cst = arith.constant dense<0.000000e+00> : vector<32x32xf32>
    %2 = tpu.matmul %0, %1, %cst {dimension_numbers = #tpu.dot_dimension_numbers<[1], [0], [0], [1], [0, 0, 1, 1], [], []>} : vector<32x48xf32>, vector<48x32xf32>, vector<32x32xf32> -> vector<32x32xf32>
    %c0_3 = arith.constant 0 : index
    %c0_4 = arith.constant 0 : index
    %3 = vector.load %arg3[%c0_3, %c0_4] : memref<1x32xf32, #tpu.memory_space<vmem>>, vector<1x32xf32>
    %4 = vector.broadcast %3 : vector<1x32xf32> to vector<32x32xf32>
    %5 = arith.addf %2, %4 : vector<32x32xf32>
    %c0_5 = arith.constant 0 : index
    %c0_6 = arith.constant 0 : index
    %6 = vector.load %arg4[%c0_5, %c0_6] : memref<32x32xf32, #tpu.memory_space<vmem>>, vector<32x32xf32>
    tpu.vector_store %arg4[%c0_5, %c0_6], %5 {strides = array<i32>} : memref<32x32xf32, #tpu.memory_space<vmem>>, vector<32x32xf32>,
    return
  }
  func.func @transform_0(%arg0: i32) -> (i32, i32) {
    %c0_i32 = arith.constant 0 : i32
    %c0_i32_0 = arith.constant 0 : i32
    return %arg0, %c0_i32 : i32, i32
  }
  func.func @transform_1(%arg0: i32) -> (i32, i32) {
    %c0_i32 = arith.constant 0 : i32
    %c0_i32_0 = arith.constant 0 : i32
    %c0_i32_1 = arith.constant 0 : i32
    return %c0_i32, %c0_i32_0 : i32, i32
  }
  func.func @transform_2(%arg0: i32) -> (i32, i32) {
    %c0_i32 = arith.constant 0 : i32
    %c0_i32_0 = arith.constant 0 : i32
    %c0_i32_1 = arith.constant 0 : i32
    return %c0_i32, %c0_i32_0 : i32, i32
  }
  func.func @transform_3(%arg0: i32) -> (i32, i32) {
    %c0_i32 = arith.constant 0 : i32
    %c0_i32_0 = arith.constant 0 : i32
    return %arg0, %c0_i32 : i32, i32
  }
}

</mosaic_0001>

<llo_original>
// kernel: tpu_custom_call.1
$region0: #{tpu_custom_call.1}
  #allocation0 [shape = 'u32[]', space=smem, size = 0x4, offset = 0x4, fixed_abs, tag = 'smem constant byte address 0x4 - core index']
  #allocation1 [shape = 'u32[144,128]{1,0:T(1,128)}', space=vmem, size = 0x12000, scoped, tag = 'internal scratch']
  %s0 = inlined_call_operand.vmem [shape: f32[32,48], index: 0, kind: input, shape index: {}]
  %s1 = inlined_call_operand.vmem [shape: f32[48,32], index: 1, kind: input, shape index: {}]
  %s2 = inlined_call_operand.vmem [shape: f32[1,32], index: 2, kind: input, shape index: {}]
  %s3 = inlined_call_operand.hbm [shape: f32[32,32], index: 3, kind: output, shape index: {}]
  %s4 = sld [smem:[#allocation0]]
  $region22: #{tpu_custom_call.1} parent=0
    _
  %s6 = ssub.s32 1, %s4
  %s7 = scalar_select 0, %s6, %s4
  $region1: #{tpu_custom_call.1} parent=0
    #allocation2 [shape = 'u8[16384]{0}', space=vmem, size = 0x4000, scoped, tag = 'output window, operand 0, single buffered']
    #allocation3 [shape = 's32[1]{0}', space=sflag, size = 0x4, scoped, tag = 'scoped memory for tpu_custom_call.1']
    %8 = vsyncpa [#allocation3], 0
    // Predicated region
    $region2: #{tpu_custom_call.1} parent=1 // pred_check
      _
    $region3: #{tpu_custom_call.1} parent=1 // pred_check_branch
      %10 = sbr.rel (0) target = $region5
    $region4: #{tpu_custom_call.1} parent=1 // pred_region
      _
    $region5: #{tpu_custom_call.1} parent=1 // pred_fallthru
      _
    // Predicated region
    $region6: #{tpu_custom_call.1} parent=1 // pred_check
      _
    $region7: #{tpu_custom_call.1} parent=1 // pred_check_branch
      %12 = sbr.rel (0) target = $region9
    $region8: #{tpu_custom_call.1} parent=1 // pred_region
      _
    $region9: #{tpu_custom_call.1} parent=1 // pred_fallthru
      _
    // Predicated region
    $region10: #{tpu_custom_call.1} parent=1 // pred_check
      _
    $region11: #{tpu_custom_call.1} parent=1 // pred_check_branch
      %14 = sbr.rel (0) target = $region13
    $region12: #{tpu_custom_call.1} parent=1 // pred_region
      _
    $region13: #{tpu_custom_call.1} parent=1 // pred_fallthru
      _
    %v15 = vld [vmem:[%s0] sm:$0xff]
    %v16 = vld [vmem:[%s0 + $0x8] sm:$0xff]
    %v17 = vld [vmem:[%s0 + $0x10] sm:$0xff]
    %v18 = vld [vmem:[%s0 + $0x18] sm:$0xff]
    %v19 = vld [vmem:[%s1] sm:$0xff]
    %v20 = vld [vmem:[%s1 + $0x8] sm:$0xff]
    %v21 = vld [vmem:[%s1 + $0x10] sm:$0xff]
    %v22 = vld [vmem:[%s1 + $0x18] sm:$0xff]
    %v23 = vld [vmem:[%s1 + $0x20] sm:$0xff]
    %v24 = vld [vmem:[%s1 + $0x28] sm:$0xff]
    %v25 = vld [vmem:[%s2] sm:$0x1]
    %v27 = vlaneseq
    %v28 = vshrl.u32 %v27, 7
    %v29 = vsub.s32 0, %v28
    %v30 = vrot.slane %v25, %v29
    %vm32 = vcmask 392192
    %v34 = vsel %vm32, %v15, 0
    %v37 = vsel %vm32, %v16, 0
    %v40 = vsel %vm32, %v17, 0
    %v43 = vsel %vm32, %v18, 0
    %45 = vmatprep.subr.mxu0 0.0
    %46 = vmatpush1.msra.mxu0 %v19
    %47 = vmatprep.subr.mxu0 0.0
    %48 = vmatpush1.msra.mxu0 %v20
    %49 = vmatprep.subr.mxu0 0.0
    %50 = vmatpush1.msra.mxu0 %v21
    %51 = vmatprep.subr.mxu0 0.0
    %52 = vmatpush1.msra.mxu0 %v22
    %53 = vmatprep.subr.mxu0 0.0
    %54 = vmatpush1.msra.mxu0 %v23
    %55 = vmatprep.subr.mxu0 0.0
    %56 = vmatpush1.msra.mxu0 %v24
    %57 = vmatprep.subr.mxu0 0.0
    %58 = vmatpush1.msra.mxu0 0.0
    %59 = vmatprep.subr.mxu0 0.0
    %60 = vmatpush1.msra.mxu0 0.0
    %61 = vmatprep.subr.mxu0 0.0
    %62 = vmatpush1.msra.mxu0 0.0
    %63 = vmatprep.subr.mxu0 0.0
    %64 = vmatpush1.msra.mxu0 0.0
    %65 = vmatprep.subr.mxu0 0.0
    %66 = vmatpush1.msra.mxu0 0.0
    %67 = vmatprep.subr.mxu0 0.0
    %68 = vmatpush1.msra.mxu0 0.0
    %69 = vmatprep.subr.mxu0 0.0
    %70 = vmatpush1.msra.mxu0 0.0
    %71 = vmatprep.subr.mxu0 0.0
    %72 = vmatpush1.msra.mxu0 0.0
    %73 = vmatprep.subr.mxu0 0.0
    %74 = vmatpush1.msra.mxu0 0.0
    %75 = vmatprep.subr.mxu0 0.0
    %76 = vmatpush1.msra.mxu0 0.0
    %77 = vmatprep.subr.mxu0 0.0
    %78 = vmatpush1.msra.mxu0 0.0
    %79 = vmatprep.subr.mxu0 0.0
    %80 = vmatpush1.msra.mxu0 0.0
    %81 = vmatprep.subr.mxu0 0.0
    %82 = vmatpush1.msra.mxu0 0.0
    %83 = vmatprep.subr.mxu0 0.0
    %84 = vmatpush1.msra.mxu0 0.0
    %85 = vmatprep.subr.mxu0 0.0
    %86 = vmatpush1.msra.mxu0 0.0
    %87 = vmatprep.subr.mxu0 0.0
    %88 = vmatpush1.msra.mxu0 0.0
    %89 = vmatprep.subr.mxu0 0.0
    %90 = vmatpush1.msra.mxu0 0.0
    %91 = vmatprep.subr.mxu0 0.0
    %92 = vmatpush1.msra.mxu0 0.0
    %93 = vmatprep.subr.mxu0 0.0
    %94 = vmatpush1.msra.mxu0 0.0
    %95 = vmatprep.subr.mxu0 0.0
    %96 = vmatpush1.msra.mxu0 0.0
    %97 = vmatprep.subr.mxu0 0.0
    %98 = vmatpush1.msra.mxu0 0.0
    %99 = vmatprep.subr.mxu0 0.0
    %100 = vmatpush1.msra.mxu0 0.0
    %101 = vmatprep.subr.mxu0 0.0
    %102 = vmatpush1.msra.mxu0 0.0
    %103 = vmatprep.subr.mxu0 0.0
    %104 = vmatpush1.msra.mxu0 0.0
    %105 = vmatprep.subr.mxu0 0.0
    %106 = vmatpush1.msra.mxu0 0.0
    %107 = vmatprep.subr.mxu0 0.0
    %108 = vmatpush1.msra.mxu0 0.0
    %109 = vmatprep.mubr.f32.mxu0 0.0
    %110 = vmatmul.mubr.f32.gmra.mrb[0].mxu0 %v34
    %v111 = vpop.f32.mrb[0].mxu0
    %v112 = vadd.f32 %v30, %v111
    %v113 = vpop.f32.mrb[0].mxu0
    %114 = vmatprep.mubr.f32.mxu0 0.0
    %115 = vmatmul.mubr.f32.gmra.mrb[0].mxu0 %v37
    %v116 = vpop.f32.mrb[0].mxu0
    %v117 = vadd.f32 %v30, %v116
    %v118 = vpop.f32.mrb[0].mxu0
    %119 = vmatprep.mubr.f32.mxu0 0.0
    %120 = vmatmul.mubr.f32.gmra.mrb[0].mxu0 %v40
    %v121 = vpop.f32.mrb[0].mxu0
    %v122 = vadd.f32 %v30, %v121
    %v123 = vpop.f32.mrb[0].mxu0
    %124 = vmatprep.mubr.f32.mxu0 0.0
    %125 = vmatmul.mubr.f32.gmra.mrb[0].mxu0 %v43
    %v126 = vpop.f32.mrb[0].mxu0
    %v127 = vadd.f32 %v30, %v126
    %v128 = vpop.f32.mrb[0].mxu0
    %129 = vdwg.mxu0
    %vm130 = vcmask 261120
    %131 = vst.msk [vmem:[#allocation2] sm:$0xff] %vm130, %v112
    %132 = vst.msk [vmem:[#allocation2 + $0x8] sm:$0xff] %vm130, %v117
    %133 = vst.msk [vmem:[#allocation2 + $0x10] sm:$0xff] %vm130, %v122
    %134 = vst.msk [vmem:[#allocation2 + $0x18] sm:$0xff] %vm130, %v127
    // Predicated region
    $region14: #{tpu_custom_call.1} parent=1 // pred_check
      _
    $region15: #{tpu_custom_call.1} parent=1 // pred_check_branch
      %136 = sbr.rel (0) target = $region17
    $region16: #{tpu_custom_call.1} parent=1 // pred_region
      %s138 = ssub.s32 512, 512
      %139 = vsyncadd [#allocation3], %s138
      %s140 = sshll.u32 [#allocation2], 4
      %s141 = int_to_ptr.vmem [resolvable:$true] %s140
      %146 = dma.vmem_to_hbm [thread:$0]  %s141, 512, %s3, [#allocation3], 128, 128, 8
    $region17: #{tpu_custom_call.1} parent=1 // pred_fallthru
      _
    // Predicated region
    $region18: #{tpu_custom_call.1} parent=1 // pred_check
      _
    $region19: #{tpu_custom_call.1} parent=1 // pred_check_branch
      %148 = sbr.rel (0) target = $region21
    $region20: #{tpu_custom_call.1} parent=1 // pred_region
      %149 = dma.done [#allocation3], 512
    $region21: #{tpu_custom_call.1} parent=1 // pred_fallthru
      _
    %150 = vsyncpa [#allocation3], 1

</llo_original>
